<compile_context>
chip_gen: v7x
topology: tpu7x:2x2x1
jax: 0.10.0
libtpu: 0.0.40
codegen_flags: <defaults>
</compile_context>

<pallas_src>
import jax
import jax.numpy as jnp
from jax.experimental import pallas as pl
from jax.experimental.pallas import tpu as pltpu


def _connector_kernel(x_ref, w_ref, shift_ref, o_ref):
    # x_ref:     [C_in, t_hw]   (batch dim squeezed by BlockSpec)
    # w_ref:     [C_out, C_in]  conv weight with BN scale pre-folded into rows
    # shift_ref: [C_out, 1]     beta + (conv_bias - mean) * scale   (or just bias)
    # o_ref:     [C_out, t_hw]
    z = jnp.dot(w_ref[...], x_ref[...], preferred_element_type=jnp.float32)
    o_ref[...] = (z + shift_ref[...]).astype(o_ref.dtype)


def prepare_connector_params(weight, bias=None, bn_gamma=None, bn_beta=None,
                             bn_mean=None, bn_var=None, bn_eps=1e-5,
                             param_dtype=None):
    """Fold conv bias + BatchNorm2d (inference) into the weight and a per-channel shift.

    Call once at parameter-creation time (parameters are reused every step), so no
    per-call weight transposes, scale multiplies, or HBM parameter copies are needed.
    weight: [C_out, C_in, 1, 1] (torch Conv2d layout).
    param_dtype: set to jnp.bfloat16 when the hooked activations are bf16 — halves the
                 weight DMA and keeps the MXU on its native bf16 path (accumulation
                 stays f32 inside the kernel).
    """
    C_out, C_in, kh, kw = weight.shape
    # TODO(synk): kernel_size>1 / stride / padding Conv2d connectors not implemented
    #             (would need im2col or shifted-matmul accumulation); DAB connectors are 1x1.
    assert (kh, kw) == (1, 1), "only 1x1 connectors implemented"
    w2 = weight.reshape(C_out, C_in).astype(jnp.float32)
    b = jnp.zeros((C_out,), jnp.float32) if bias is None else bias.astype(jnp.float32)
    if bn_gamma is None:
        shift = b
    else:
        scale = bn_gamma.astype(jnp.float32) * jax.lax.rsqrt(
            bn_var.astype(jnp.float32) + jnp.float32(bn_eps))
        shift = bn_beta.astype(jnp.float32) + (b - bn_mean.astype(jnp.float32)) * scale
        w2 = w2 * scale[:, None]          # fold BN scale into the weight rows
    if param_dtype is not None:
        w2 = w2.astype(param_dtype)
    return w2, shift.reshape(C_out, 1).astype(jnp.float32)


def connector4dab_apply(x, w2, shift2, *, t_hw=512, out_dtype=None):
    """Apply one DAB connector (1x1 conv with folded BN) to NCHW input x."""
    N, C_in, H, W = x.shape
    C_out = w2.shape[0]
    hw = H * W
    xf = x.reshape(N, C_in, hw)                   # free in NCHW (no data movement)
    out_dtype = x.dtype if out_dtype is None else jnp.dtype(out_dtype)

    # Lane-dense spatial tile. No padding of the array: Pallas masks the ragged
    # last block's store. Tile is a multiple of 128 that never exceeds hw (so no
    # block is larger than the array); tiny maps (hw < 128) use a full-dim block.
    if hw < 128:
        t_hw_eff = hw
    else:
        hw_floor = (hw // 128) * 128
        t_hw_eff = max(128, (min(t_hw, hw_floor) // 128) * 128)
    num_tiles = pl.cdiv(hw, t_hw_eff)

    # v7x has 2 TensorCores: if the parallel grid would degenerate to a single
    # step, shrink the spatial tile so both cores get work.
    while N * num_tiles < 2 and t_hw_eff > 128:
        t_hw_eff = max(128, ((t_hw_eff // 2) // 128) * 128)
        num_tiles = pl.cdiv(hw, t_hw_eff)

    grid = (N, num_tiles)

    # Advisory cost estimate so XLA can overlap this call with surrounding ops.
    x_item = jnp.dtype(x.dtype).itemsize
    o_item = out_dtype.itemsize
    w_bytes = w2.size * jnp.dtype(w2.dtype).itemsize
    cost = pl.CostEstimate(
        flops=2 * N * C_out * C_in * hw,
        transcendentals=0,
        bytes_accessed=N * C_in * hw * x_item + N * C_out * hw * o_item
                       + w_bytes + C_out * 4,
    )

    # VMEM budget: double-buffered x/out tiles + (double-buffered) resident params.
    # Only raise the scoped-VMEM limit when the default (16/32 MiB) is too small;
    # cap at 64 MiB so the same choice also fits v7x's physical VMEM.
    vmem_est = (2 * C_in * t_hw_eff * x_item
                + 2 * C_out * t_hw_eff * o_item
                + 2 * w_bytes
                + 2 * C_out * 4)
    compiler_kwargs = dict(dimension_semantics=("parallel", "parallel"))
    if vmem_est > 16 * 1024 * 1024:
        compiler_kwargs["vmem_limit_bytes"] = min(int(vmem_est * 1.5), 64 * 1024 * 1024)

    out = pl.pallas_call(
        _connector_kernel,
        out_shape=jax.ShapeDtypeStruct((N, C_out, hw), out_dtype),
        grid_spec=pltpu.PrefetchScalarGridSpec(
            num_scalar_prefetch=0,
            grid=grid,
            in_specs=[
                pl.BlockSpec((None, C_in, t_hw_eff), lambda n, j: (n, 0, j)),  # x tile
                pl.BlockSpec((C_out, C_in), lambda n, j: (0, 0)),              # folded weight
                pl.BlockSpec((C_out, 1), lambda n, j: (0, 0)),                 # folded shift
            ],
            out_specs=pl.BlockSpec((None, C_out, t_hw_eff), lambda n, j: (n, 0, j)),
        ),
        compiler_params=pltpu.CompilerParams(**compiler_kwargs),
        cost_estimate=cost,
    )(xf, w2, shift2)

    return out.reshape(N, C_out, H, W)


def connector4dab_ref(x, weight, bias, bn_gamma, bn_beta, bn_mean, bn_var, bn_eps=1e-5):
    """Pure-JAX reference: Conv2d(1x1) + BatchNorm2d (inference)."""
    z = jax.lax.conv_general_dilated(
        x, weight, window_strides=(1, 1), padding="VALID",
        dimension_numbers=("NCHW", "OIHW", "NCHW"))
    if bias is not None:
        z = z + bias[None, :, None, None]
    if bn_gamma is not None:
        inv = jax.lax.rsqrt(bn_var + bn_eps)
        z = (z - bn_mean[None, :, None, None]) * (bn_gamma * inv)[None, :, None, None] \
            + bn_beta[None, :, None, None]
    return z


if __name__ == "__main__":
    # Small deterministic connector: batch=2, C_in=32 -> C_out=128.
    # Two spatial cases: 16x16 (hw divides the tile) and 14x14 (ragged last block,
    # exercising the mask-instead-of-pad path typical of ResNet feature maps).
    N, C_IN, C_OUT = 2, 32, 128
    key = jax.random.PRNGKey(0)
    kw_, kb, kg, kbe, km, kv, kx1, kx2 = jax.random.split(key, 8)

    bound = 1.0 / (C_IN ** 0.5)
    weight = jax.random.uniform(kw_, (C_OUT, C_IN, 1, 1), jnp.float32, -bound, bound)
    bias = jax.random.uniform(kb, (C_OUT,), jnp.float32, -bound, bound)
    bn_gamma = 1.0 + 0.1 * jax.random.normal(kg, (C_OUT,), jnp.float32)
    bn_beta = 0.1 * jax.random.normal(kbe, (C_OUT,), jnp.float32)
    bn_mean = 0.1 * jax.random.normal(km, (C_OUT,), jnp.float32)
    bn_var = jax.random.uniform(kv, (C_OUT,), jnp.float32, 0.5, 1.5)

    # One-time parameter prep (fold bias + BN scale/shift into weight + shift).
    w2, shift2 = prepare_connector_params(
        weight, bias, bn_gamma, bn_beta, bn_mean, bn_var)

    for kx, (H, W) in ((kx1, (16, 16)), (kx2, (14, 14))):
        x = jax.random.normal(kx, (N, C_IN, H, W), dtype=jnp.float32)
        out = connector4dab_apply(x, w2, shift2)
        out = jax.block_until_ready(out)
        ref = connector4dab_ref(x, weight, bias, bn_gamma, bn_beta, bn_mean, bn_var)
        assert out.shape == (N, C_OUT, H, W)
        assert jnp.allclose(out, ref, atol=1e-4, rtol=1e-4), f"mismatch vs reference {H}x{W}"

    print("KERNEL_OK")
</pallas_src>

<mosaic_0001>
module attributes {stable_mosaic.version = 11 : i64} {
  func.func @_connector_kernel(%arg0: i32, %arg1: i32, %arg2: memref<1x32x256xf32, #tpu.memory_space<vmem>>, %arg3: memref<128x32xf32, #tpu.memory_space<vmem>>, %arg4: memref<128x1xf32, #tpu.memory_space<vmem>>, %arg5: memref<1x128x256xf32, #tpu.memory_space<vmem>>) attributes {dimension_semantics = [#tpu.dimension_semantics<parallel>, #tpu.dimension_semantics<parallel>], iteration_bounds = array<i64: 2, 1>, scalar_prefetch = 0 : i64, scratch_operands = 0 : i64, tpu.core_type = #tpu.core_type<tc>, window_params = [{transform_indices = @transform_0, window_bounds = array<i64: 1, 32, 256>}, {pipeline_mode = #tpu.pipeline_mode<synchronous>, transform_indices = @transform_1, window_bounds = array<i64: 128, 32>}, {pipeline_mode = #tpu.pipeline_mode<synchronous>, transform_indices = @transform_2, window_bounds = array<i64: 128, 1>}, {transform_indices = @transform_3, window_bounds = array<i64: 1, 128, 256>}]} {
    %c0 = arith.constant 0 : index
    %c0_0 = arith.constant 0 : index
    %0 = vector.load %arg3[%c0, %c0_0] : memref<128x32xf32, #tpu.memory_space<vmem>>, vector<128x32xf32>
    %c0_1 = arith.constant 0 : index
    %c0_2 = arith.constant 0 : index
    %c0_3 = arith.constant 0 : index
    %1 = vector.load %arg2[%c0_1, %c0_2, %c0_3] : memref<1x32x256xf32, #tpu.memory_space<vmem>>, vector<1x32x256xf32>
    %2 = vector.shape_cast %1 : vector<1x32x256xf32> to vector<32x256xf32>
    %cst = arith.constant dense<0.000000e+00> : vector<128x256xf32>
    %3 = tpu.matmul %0, %2, %cst {dimension_numbers = #tpu.dot_dimension_numbers<[1], [0], [0], [1], [0, 0, 1, 1], [], []>} : vector<128x32xf32>, vector<32x256xf32>, vector<128x256xf32> -> vector<128x256xf32>
    %c0_4 = arith.constant 0 : index
    %c0_5 = arith.constant 0 : index
    %4 = vector.load %arg4[%c0_4, %c0_5] : memref<128x1xf32, #tpu.memory_space<vmem>>, vector<128x1xf32>
    %5 = vector.broadcast %4 : vector<128x1xf32> to vector<128x256xf32>
    %6 = arith.addf %3, %5 : vector<128x256xf32>
    %c0_6 = arith.constant 0 : index
    %c0_7 = arith.constant 0 : index
    %c0_8 = arith.constant 0 : index
    %7 = vector.load %arg5[%c0_6, %c0_7, %c0_8] : memref<1x128x256xf32, #tpu.memory_space<vmem>>, vector<1x128x256xf32>
    %8 = vector.shape_cast %7 : vector<1x128x256xf32> to vector<128x256xf32>
    %9 = vector.shape_cast %6 : vector<128x256xf32> to vector<1x128x256xf32>
    tpu.vector_store %arg5[%c0_6, %c0_7, %c0_8], %9 {strides = array<i32>} : memref<1x128x256xf32, #tpu.memory_space<vmem>>, vector<1x128x256xf32>,
    return
  }
  func.func @transform_0(%arg0: i32, %arg1: i32) -> (i32, i32, i32) {
    %c0_i32 = arith.constant 0 : i32
    %c0_i32_0 = arith.constant 0 : i32
    return %arg0, %c0_i32, %arg1 : i32, i32, i32
  }
  func.func @transform_1(%arg0: i32, %arg1: i32) -> (i32, i32) {
    %c0_i32 = arith.constant 0 : i32
    %c0_i32_0 = arith.constant 0 : i32
    %c0_i32_1 = arith.constant 0 : i32
    return %c0_i32, %c0_i32_0 : i32, i32
  }
  func.func @transform_2(%arg0: i32, %arg1: i32) -> (i32, i32) {
    %c0_i32 = arith.constant 0 : i32
    %c0_i32_0 = arith.constant 0 : i32
    %c0_i32_1 = arith.constant 0 : i32
    return %c0_i32, %c0_i32_0 : i32, i32
  }
  func.func @transform_3(%arg0: i32, %arg1: i32) -> (i32, i32, i32) {
    %c0_i32 = arith.constant 0 : i32
    %c0_i32_0 = arith.constant 0 : i32
    return %arg0, %c0_i32, %arg1 : i32, i32, i32
  }
}

</mosaic_0001>

<llo_original>
// kernel: tpu_custom_call.1
$region0: #{tpu_custom_call.1}
  #allocation0 [shape = 'u32[]', space=smem, size = 0x4, offset = 0x4, fixed_abs, tag = 'smem constant byte address 0x4 - core index']
  #allocation1 [shape = 'u32[144,128]{1,0:T(1,128)}', space=vmem, size = 0x12000, scoped, tag = 'internal scratch']
  %s0 = inlined_call_operand.vmem [shape: f32[2,32,256], index: 0, kind: input, shape index: {}]
  %s1 = inlined_call_operand.vmem [shape: f32[128,32], index: 1, kind: input, shape index: {}]
  %s2 = inlined_call_operand.vmem [shape: f32[128,1], index: 2, kind: input, shape index: {}]
  %s3 = inlined_call_operand.hbm [shape: f32[2,128,256], index: 3, kind: output, shape index: {}]
  %s4 = sld [smem:[#allocation0]]
  $region45: #{tpu_custom_call.1} parent=0
    _
  %s6 = ssub.s32 1, %s4
  %s7 = scalar_select 0, %s6, %s4
  $region1: #{tpu_custom_call.1} parent=0
    #allocation2 [shape = 'u8[262144]{0}', space=vmem, size = 0x40000, scoped, tag = 'output window, operand 0']
    #allocation3 [shape = 's32[2]{0}', space=sflag, size = 0x8, scoped, tag = 'scoped memory for tpu_custom_call.1']
    %8 = vsyncpa [#allocation3], 0
    %s9 = scalar_lea.sflag [#allocation3], 1
    %10 = vsyncpa %s9, 0
    loop: start=0, step=1, limit=4
    $region2: #{tpu_custom_call.1} parent=1 // loop_pre_header
      _
    $region3: #{tpu_custom_call.1} parent=1 // loop_header
      %s12 = sphi 0, %s16
      %p13 = scmp.ge.s32.totalorder %s12, 4
      %s19 = sphi 0, %s31
      %s20 = sphi 0, %s27
      %s21 = sphi 0, %s19
      %s22 = sphi 0, %s20
      %s23 = sphi 0, %s21
      %s24 = sphi 0, %s22
      %s36 = sphi 0, %s38
      %s39 = sphi 0, %s36
      %s40 = sphi 0, %s39
      %s56 = sphi 0, %s40
      %s60 = sphi 0, %s60
      %s62 = sphi 0, %s60
      %s63 = sphi 0, %s62
      %s77 = sphi 0, %s63
      %s81 = sphi 0, %s81
      %s83 = sphi 0, %s81
      %s84 = sphi 0, %s83
      %s98 = sphi 0, %s84
      %s106 = sphi 0, %s108
      %s109 = sphi 0, %s106
      %s110 = sphi 0, %s109
      %s126 = sphi 0, %s110
    $region4: #{tpu_custom_call.1} parent=1 // loop_header_branch
      %15 = sbr.rel (%p13) target = $region8
    $region5: #{tpu_custom_call.1} parent=1 // loop_body
      %s17 = ssub.s32 %s12, 1
      %s18 = ssub.s32 %s12, 2
      %s25 = sadd.s32 1, %s20
      %p26 = scmp.ge.s32.totalorder %s25, 1
      %s27 = scalar_select %p26, 0, %s25
      %s28 = sadd.s32 1, %s19
      %s29 = scalar_select %p26, %s28, %s19
      %p30 = scmp.ge.s32.totalorder %s29, 2
      %s31 = scalar_select %p30, 0, %s29
      %s32 = ssub.s32 %s19, %s31
      %s33 = ssub.s32 %s20, %s27
      %s34 = sor.u32 %s32, %s33
      %p35 = scmp.eq.s32.totalorder %s34, 0
      %s37 = sadd.s32 %s36, 1
      %s38 = scalar_select %p35, %s36, %s37
      %p41 = pneg %p35
      %p42 = scmp.eq.s32.totalorder %s12, 1
      %p43 = por %p41, %p42
      %p44 = scmp.ne.s32.totalorder %s36, %s39
      %p45 = scmp.eq.s32.totalorder %s12, 0
      %p46 = por %p44, %p45
      %p47 = scmp.ne.s32.totalorder %s36, %s39
      %p48 = scmp.eq.s32.totalorder %s17, 1
      %p49 = por %p47, %p48
      %p50 = scmp.ne.s32.totalorder %s39, %s40
      %p51 = scmp.eq.s32.totalorder %s17, 0
      %p52 = por %p50, %p51
      %p53 = scmp.ne.s32.totalorder %s39, %s40
      %p54 = scmp.eq.s32.totalorder %s18, 1
      %p55 = por %p53, %p54
      %p57 = scmp.ne.s32.totalorder %s40, %s56
      %p58 = scmp.eq.s32.totalorder %s18, 0
      %p59 = por %p57, %p58
      %s61 = sadd.s32 %s60, 1
      %p64 = scmp.eq.s32.totalorder %s12, 1
      %p65 = scmp.ne.s32.totalorder %s60, %s62
      %p66 = scmp.eq.s32.totalorder %s12, 0
      %p67 = por %p65, %p66
      %p68 = scmp.ne.s32.totalorder %s60, %s62
      %p69 = scmp.eq.s32.totalorder %s17, 1
      %p70 = por %p68, %p69
      %p71 = scmp.ne.s32.totalorder %s62, %s63
      %p72 = scmp.eq.s32.totalorder %s17, 0
      %p73 = por %p71, %p72
      %p74 = scmp.ne.s32.totalorder %s62, %s63
      %p75 = scmp.eq.s32.totalorder %s18, 1
      %p76 = por %p74, %p75
      %p78 = scmp.ne.s32.totalorder %s63, %s77
      %p79 = scmp.eq.s32.totalorder %s18, 0
      %p80 = por %p78, %p79
      %s82 = sadd.s32 %s81, 1
      %p85 = scmp.eq.s32.totalorder %s12, 1
      %p86 = scmp.ne.s32.totalorder %s81, %s83
      %p87 = scmp.eq.s32.totalorder %s12, 0
      %p88 = por %p86, %p87
      %p89 = scmp.ne.s32.totalorder %s81, %s83
      %p90 = scmp.eq.s32.totalorder %s17, 1
      %p91 = por %p89, %p90
      %p92 = scmp.ne.s32.totalorder %s83, %s84
      %p93 = scmp.eq.s32.totalorder %s17, 0
      %p94 = por %p92, %p93
      %p95 = scmp.ne.s32.totalorder %s83, %s84
      %p96 = scmp.eq.s32.totalorder %s18, 1
      %p97 = por %p95, %p96
      %p99 = scmp.ne.s32.totalorder %s84, %s98
      %p100 = scmp.eq.s32.totalorder %s18, 0
      %p101 = por %p99, %p100
      %s102 = ssub.s32 %s19, %s31
      %s103 = ssub.s32 %s20, %s27
      %s104 = sor.u32 %s102, %s103
      %p105 = scmp.eq.s32.totalorder %s104, 0
      %s107 = sadd.s32 %s106, 1
      %s108 = scalar_select %p105, %s106, %s107
      %p111 = pneg %p105
      %p112 = scmp.eq.s32.totalorder %s12, 1
      %p113 = por %p111, %p112
      %p114 = scmp.ne.s32.totalorder %s106, %s109
      %p115 = scmp.eq.s32.totalorder %s12, 0
      %p116 = por %p114, %p115
      %p117 = scmp.ne.s32.totalorder %s106, %s109
      %p118 = scmp.eq.s32.totalorder %s17, 1
      %p119 = por %p117, %p118
      %p120 = scmp.ne.s32.totalorder %s109, %s110
      %p121 = scmp.eq.s32.totalorder %s17, 0
      %p122 = por %p120, %p121
      %p123 = scmp.ne.s32.totalorder %s109, %s110
      %p124 = scmp.eq.s32.totalorder %s18, 1
      %p125 = por %p123, %p124
      %p127 = scmp.ne.s32.totalorder %s110, %s126
      %p128 = scmp.eq.s32.totalorder %s18, 0
      %p129 = por %p127, %p128
      %p130 = scmp.le.s32.totalorder 1, %s12
      %p131 = scmp.lt.s32.totalorder %s12, 3
      %p132 = pnand %p130, %p131
      %p133 = pneg %p132
      // Predicated region
      $region9: #{tpu_custom_call.1} parent=5 // pred_check
        _
      $region10: #{tpu_custom_call.1} parent=5 // pred_check_branch
        %135 = sbr.rel (%p132) target = $region12
      $region11: #{tpu_custom_call.1} parent=5 // pred_region
        %s136 = ssub.s32 %s12, 1
        // Predicated region
        $region13: #{tpu_custom_call.1} parent=11 // pred_check
          %p137 = pneg %p73
        $region14: #{tpu_custom_call.1} parent=11 // pred_check_branch
          %139 = sbr.rel (%p137) target = $region16
        $region15: #{tpu_custom_call.1} parent=11 // pred_region
          _
        $region16: #{tpu_custom_call.1} parent=11 // pred_fallthru
          _
        // Predicated region
        $region17: #{tpu_custom_call.1} parent=11 // pred_check
          %p140 = pneg %p94
        $region18: #{tpu_custom_call.1} parent=11 // pred_check_branch
          %142 = sbr.rel (%p140) target = $region20
        $region19: #{tpu_custom_call.1} parent=11 // pred_region
          _
        $region20: #{tpu_custom_call.1} parent=11 // pred_fallthru
          _
      $region12: #{tpu_custom_call.1} parent=5 // pred_fallthru
        _
      %p143 = scmp.lt.s32.totalorder %s12, 2
      // Predicated region
      $region21: #{tpu_custom_call.1} parent=5 // pred_check
        %p144 = pneg %p143
      $region22: #{tpu_custom_call.1} parent=5 // pred_check_branch
        %146 = sbr.rel (%p144) target = $region24
      $region23: #{tpu_custom_call.1} parent=5 // pred_region
        // Predicated region
        $region25: #{tpu_custom_call.1} parent=23 // pred_check
          %p147 = pneg %p46
        $region26: #{tpu_custom_call.1} parent=23 // pred_check_branch
          %149 = sbr.rel (%p147) target = $region28
        $region27: #{tpu_custom_call.1} parent=23 // pred_region
          %s150 = smul.u32 2, %s20
          %p151 = scmp.lt.s32.totalorder %s19, 1
          %s152 = scalar_select %p151, %s19, 1
          %p153 = scmp.lt.s32.totalorder %s150, 1
          %s154 = scalar_select %p153, %s150, 1
          %s155 = smul.addr %s152, 8
          %s156 = sadd.s32 %s154, %s155
          %s157 = smul.addr %s156, 8
          %s158 = scalar_lea.vmem %s0, %s157
          %s159 = smul.u32 2, %s20
        $region28: #{tpu_custom_call.1} parent=23 // pred_fallthru
          _
      $region24: #{tpu_custom_call.1} parent=5 // pred_fallthru
        _
      %p160 = scmp.le.s32.totalorder 1, %s12
      %p161 = scmp.lt.s32.totalorder %s12, 3
      %p162 = pnand %p160, %p161
      %p163 = pneg %p162
      // Predicated region
      $region29: #{tpu_custom_call.1} parent=5 // pred_check
        _
      $region30: #{tpu_custom_call.1} parent=5 // pred_check_branch
        %165 = sbr.rel (%p162) target = $region32
      $region31: #{tpu_custom_call.1} parent=5 // pred_region
        %s166 = ssub.s32 %s12, 1
        %s167 = smul.u32 2, %s22
        %p168 = scmp.lt.s32.totalorder %s21, 1
        %s169 = scalar_select %p168, %s21, 1
        %p170 = scmp.lt.s32.totalorder %s167, 1
        %s171 = scalar_select %p170, %s167, 1
        %s172 = smul.addr %s169, 8
        %s173 = sadd.s32 %s171, %s172
        %s174 = smul.addr %s173, 8
        %s175 = scalar_lea.vmem %s0, %s174
        %p176 = pneg %p52
        %p177 = pneg %p49
        %p178 = pneg %p73
        %p179 = pneg %p70
        %p180 = pneg %p94
        %p181 = pneg %p91
        %p182 = pneg %p122
        %p183 = pneg %p119
        %s184 = sand.u32 %s109, 1
        %s185 = scalar_lea.sflag [#allocation3], %s184
        %s186 = sand.u32 %s109, 1
        %s187 = smul.addr %s186, 256
        %s188 = scalar_lea.vmem [#allocation2], %s187
        %s189 = smul.u32 2, %s22
        %p190 = scmp.lt.s32.totalorder %s21, 1
        %s191 = scalar_select %p190, %s21, 1
        %p192 = scmp.lt.s32.totalorder %s189, 1
        %s193 = scalar_select %p192, %s189, 1
        %s194 = smul.addr %s191, 8
        %s195 = sadd.s32 %s193, %s194
        %s196 = smul.addr %s195, 8
        %s197 = scalar_lea.vmem %s0, %s196
        %s198 = smul.u32 2, %s22
        %s199 = smul.u32 2, %s22
        %v200 = vld [vmem:[%s1] sm:$0xff]
        %v201 = vld [vmem:[%s1 + $0x8] sm:$0xff]
        %v202 = vld [vmem:[%s1 + $0x10] sm:$0xff]
        %v203 = vld [vmem:[%s1 + $0x18] sm:$0xff]
        %v204 = vld [vmem:[%s1 + $0x20] sm:$0xff]
        %v205 = vld [vmem:[%s1 + $0x28] sm:$0xff]
        %v206 = vld [vmem:[%s1 + $0x30] sm:$0xff]
        %v207 = vld [vmem:[%s1 + $0x38] sm:$0xff]
        %v208 = vld [vmem:[%s1 + $0x40] sm:$0xff]
        %v209 = vld [vmem:[%s1 + $0x48] sm:$0xff]
        %v210 = vld [vmem:[%s1 + $0x50] sm:$0xff]
        %v211 = vld [vmem:[%s1 + $0x58] sm:$0xff]
        %v212 = vld [vmem:[%s1 + $0x60] sm:$0xff]
        %v213 = vld [vmem:[%s1 + $0x68] sm:$0xff]
        %v214 = vld [vmem:[%s1 + $0x70] sm:$0xff]
        %v215 = vld [vmem:[%s1 + $0x78] sm:$0xff]
        %v216 = vld [vmem:[%s197] sm:$0xff]
        %v217 = vld [vmem:[%s197 + $0x8] sm:$0xff]
        %v218 = vld [vmem:[%s197 + $0x10] sm:$0xff]
        %v219 = vld [vmem:[%s197 + $0x18] sm:$0xff]
        %v220 = vld [vmem:[%s197 + $0x20] sm:$0xff]
        %v221 = vld [vmem:[%s197 + $0x28] sm:$0xff]
        %v222 = vld [vmem:[%s197 + $0x30] sm:$0xff]
        %v223 = vld [vmem:[%s197 + $0x38] sm:$0xff]
        %v224 = vld [vmem:[%s2] sm:$0xff]
        %v225 = vld [vmem:[%s2 + $0x8] sm:$0xff]
        %v226 = vld [vmem:[%s2 + $0x10] sm:$0xff]
        %v227 = vld [vmem:[%s2 + $0x18] sm:$0xff]
        %v228 = vld [vmem:[%s2 + $0x20] sm:$0xff]
        %v229 = vld [vmem:[%s2 + $0x28] sm:$0xff]
        %v230 = vld [vmem:[%s2 + $0x30] sm:$0xff]
        %v231 = vld [vmem:[%s2 + $0x38] sm:$0xff]
        %v232 = vld [vmem:[%s2 + $0x40] sm:$0xff]
        %v233 = vld [vmem:[%s2 + $0x48] sm:$0xff]
        %v234 = vld [vmem:[%s2 + $0x50] sm:$0xff]
        %v235 = vld [vmem:[%s2 + $0x58] sm:$0xff]
        %v236 = vld [vmem:[%s2 + $0x60] sm:$0xff]
        %v237 = vld [vmem:[%s2 + $0x68] sm:$0xff]
        %v238 = vld [vmem:[%s2 + $0x70] sm:$0xff]
        %v239 = vld [vmem:[%s2 + $0x78] sm:$0xff]
        %241 = vset.pattern.permute.xlu0 0
        %242 = vperm.xlu0 %241, %v224
        %v243 = vpop.permute.xlu0 %242
        %246 = vset.pattern.permute.xlu0 0
        %247 = vperm.xlu0 %246, %v225
        %v248 = vpop.permute.xlu0 %247
        %251 = vset.pattern.permute.xlu0 0
        %252 = vperm.xlu0 %251, %v226
        %v253 = vpop.permute.xlu0 %252
        %256 = vset.pattern.permute.xlu0 0
        %257 = vperm.xlu0 %256, %v227
        %v258 = vpop.permute.xlu0 %257
        %261 = vset.pattern.permute.xlu0 0
        %262 = vperm.xlu0 %261, %v228
        %v263 = vpop.permute.xlu0 %262
        %266 = vset.pattern.permute.xlu0 0
        %267 = vperm.xlu0 %266, %v229
        %v268 = vpop.permute.xlu0 %267
        %271 = vset.pattern.permute.xlu0 0
        %272 = vperm.xlu0 %271, %v230
        %v273 = vpop.permute.xlu0 %272
        %276 = vset.pattern.permute.xlu0 0
        %277 = vperm.xlu0 %276, %v231
        %v278 = vpop.permute.xlu0 %277
        %281 = vset.pattern.permute.xlu0 0
        %282 = vperm.xlu0 %281, %v232
        %v283 = vpop.permute.xlu0 %282
        %286 = vset.pattern.permute.xlu0 0
        %287 = vperm.xlu0 %286, %v233
        %v288 = vpop.permute.xlu0 %287
        %291 = vset.pattern.permute.xlu0 0
        %292 = vperm.xlu0 %291, %v234
        %v293 = vpop.permute.xlu0 %292
        %296 = vset.pattern.permute.xlu0 0
        %297 = vperm.xlu0 %296, %v235
        %v298 = vpop.permute.xlu0 %297
        %301 = vset.pattern.permute.xlu0 0
        %302 = vperm.xlu0 %301, %v236
        %v303 = vpop.permute.xlu0 %302
        %306 = vset.pattern.permute.xlu0 0
        %307 = vperm.xlu0 %306, %v237
        %v308 = vpop.permute.xlu0 %307
        %311 = vset.pattern.permute.xlu0 0
        %312 = vperm.xlu0 %311, %v238
        %v313 = vpop.permute.xlu0 %312
        %316 = vset.pattern.permute.xlu0 0
        %317 = vperm.xlu0 %316, %v239
        %v318 = vpop.permute.xlu0 %317
        %vm320 = vcmask 261120
        %v322 = vsel %vm320, %v200, 0
        %v325 = vsel %vm320, %v201, 0
        %v328 = vsel %vm320, %v202, 0
        %v331 = vsel %vm320, %v203, 0
        %v334 = vsel %vm320, %v204, 0
        %v337 = vsel %vm320, %v205, 0
        %v340 = vsel %vm320, %v206, 0
        %v343 = vsel %vm320, %v207, 0
        %v346 = vsel %vm320, %v208, 0
        %v349 = vsel %vm320, %v209, 0
        %v352 = vsel %vm320, %v210, 0
        %v355 = vsel %vm320, %v211, 0
        %v358 = vsel %vm320, %v212, 0
        %v361 = vsel %vm320, %v213, 0
        %v364 = vsel %vm320, %v214, 0
        %v367 = vsel %vm320, %v215, 0
        %369 = vmatprep.subr.mxu0 %v217
        %370 = vmatpush1.msra.mxu0 %v216
        %371 = vmatprep.subr.mxu0 %v219
        %372 = vmatpush1.msra.mxu0 %v218
        %373 = vmatprep.subr.mxu0 %v221
        %374 = vmatpush1.msra.mxu0 %v220
        %375 = vmatprep.subr.mxu0 %v223
        %376 = vmatpush1.msra.mxu0 %v222
        %377 = vmatprep.subr.mxu0 0.0
        %378 = vmatpush1.msra.mxu0 0.0
        %379 = vmatprep.subr.mxu0 0.0
        %380 = vmatpush1.msra.mxu0 0.0
        %381 = vmatprep.subr.mxu0 0.0
        %382 = vmatpush1.msra.mxu0 0.0
        %383 = vmatprep.subr.mxu0 0.0
        %384 = vmatpush1.msra.mxu0 0.0
        %385 = vmatprep.subr.mxu0 0.0
        %386 = vmatpush1.msra.mxu0 0.0
        %387 = vmatprep.subr.mxu0 0.0
        %388 = vmatpush1.msra.mxu0 0.0
        %389 = vmatprep.subr.mxu0 0.0
        %390 = vmatpush1.msra.mxu0 0.0
        %391 = vmatprep.subr.mxu0 0.0
        %392 = vmatpush1.msra.mxu0 0.0
        %393 = vmatprep.subr.mxu0 0.0
        %394 = vmatpush1.msra.mxu0 0.0
        %395 = vmatprep.subr.mxu0 0.0
        %396 = vmatpush1.msra.mxu0 0.0
        %397 = vmatprep.subr.mxu0 0.0
        %398 = vmatpush1.msra.mxu0 0.0
        %399 = vmatprep.subr.mxu0 0.0
        %400 = vmatpush1.msra.mxu0 0.0
        %401 = vmatprep.subr.mxu0 0.0
        %402 = vmatpush1.msra.mxu0 0.0
        %403 = vmatprep.subr.mxu0 0.0
        %404 = vmatpush1.msra.mxu0 0.0
        %405 = vmatprep.subr.mxu0 0.0
        %406 = vmatpush1.msra.mxu0 0.0
        %407 = vmatprep.subr.mxu0 0.0
        %408 = vmatpush1.msra.mxu0 0.0
        %409 = vmatprep.subr.mxu0 0.0
        %410 = vmatpush1.msra.mxu0 0.0
        %411 = vmatprep.subr.mxu0 0.0
        %412 = vmatpush1.msra.mxu0 0.0
        %413 = vmatprep.subr.mxu0 0.0
        %414 = vmatpush1.msra.mxu0 0.0
        %415 = vmatprep.subr.mxu0 0.0
        %416 = vmatpush1.msra.mxu0 0.0
        %417 = vmatprep.subr.mxu0 0.0
        %418 = vmatpush1.msra.mxu0 0.0
        %419 = vmatprep.subr.mxu0 0.0
        %420 = vmatpush1.msra.mxu0 0.0
        %421 = vmatprep.subr.mxu0 0.0
        %422 = vmatpush1.msra.mxu0 0.0
        %423 = vmatprep.subr.mxu0 0.0
        %424 = vmatpush1.msra.mxu0 0.0
        %425 = vmatprep.subr.mxu0 0.0
        %426 = vmatpush1.msra.mxu0 0.0
        %427 = vmatprep.subr.mxu0 0.0
        %428 = vmatpush1.msra.mxu0 0.0
        %429 = vmatprep.subr.mxu0 0.0
        %430 = vmatpush1.msra.mxu0 0.0
        %431 = vmatprep.subr.mxu0 0.0
        %432 = vmatpush1.msra.mxu0 0.0
        %433 = vmatprep.mubr.f32.mxu0 0.0
        %434 = vmatmul.mubr.f32.gmra.mrb[0].mxu0 %v322
        %v435 = vpop.f32.mrb[0].mxu0
        %v436 = vadd.f32 %v243, %v435
        %v437 = vpop.f32.mrb[0].mxu0
        %v438 = vadd.f32 %v243, %v437
        %439 = vmatprep.mubr.f32.mxu0 0.0
        %440 = vmatmul.mubr.f32.gmra.mrb[0].mxu0 %v325
        %v441 = vpop.f32.mrb[0].mxu0
        %v442 = vadd.f32 %v248, %v441
        %v443 = vpop.f32.mrb[0].mxu0
        %v444 = vadd.f32 %v248, %v443
        %445 = vmatprep.mubr.f32.mxu0 0.0
        %446 = vmatmul.mubr.f32.gmra.mrb[0].mxu0 %v328
        %v447 = vpop.f32.mrb[0].mxu0
        %v448 = vadd.f32 %v253, %v447
        %v449 = vpop.f32.mrb[0].mxu0
        %v450 = vadd.f32 %v253, %v449
        %451 = vmatprep.mubr.f32.mxu0 0.0
        %452 = vmatmul.mubr.f32.gmra.mrb[0].mxu0 %v331
        %v453 = vpop.f32.mrb[0].mxu0
        %v454 = vadd.f32 %v258, %v453
        %v455 = vpop.f32.mrb[0].mxu0
        %v456 = vadd.f32 %v258, %v455
        %457 = vmatprep.mubr.f32.mxu0 0.0
        %458 = vmatmul.mubr.f32.gmra.mrb[0].mxu0 %v334
        %v459 = vpop.f32.mrb[0].mxu0
        %v460 = vadd.f32 %v263, %v459
        %v461 = vpop.f32.mrb[0].mxu0
        %v462 = vadd.f32 %v263, %v461
        %463 = vmatprep.mubr.f32.mxu0 0.0
        %464 = vmatmul.mubr.f32.gmra.mrb[0].mxu0 %v337
        %v465 = vpop.f32.mrb[0].mxu0
        %v466 = vadd.f32 %v268, %v465
        %v467 = vpop.f32.mrb[0].mxu0
        %v468 = vadd.f32 %v268, %v467
        %469 = vmatprep.mubr.f32.mxu0 0.0
        %470 = vmatmul.mubr.f32.gmra.mrb[0].mxu0 %v340
        %v471 = vpop.f32.mrb[0].mxu0
        %v472 = vadd.f32 %v273, %v471
        %v473 = vpop.f32.mrb[0].mxu0
        %v474 = vadd.f32 %v273, %v473
        %475 = vmatprep.mubr.f32.mxu0 0.0
        %476 = vmatmul.mubr.f32.gmra.mrb[0].mxu0 %v343
        %v477 = vpop.f32.mrb[0].mxu0
        %v478 = vadd.f32 %v278, %v477
        %v479 = vpop.f32.mrb[0].mxu0
        %v480 = vadd.f32 %v278, %v479
        %481 = vmatprep.mubr.f32.mxu0 0.0
        %482 = vmatmul.mubr.f32.gmra.mrb[0].mxu0 %v346
        %v483 = vpop.f32.mrb[0].mxu0
        %v484 = vadd.f32 %v283, %v483
        %v485 = vpop.f32.mrb[0].mxu0
        %v486 = vadd.f32 %v283, %v485
        %487 = vmatprep.mubr.f32.mxu0 0.0
        %488 = vmatmul.mubr.f32.gmra.mrb[0].mxu0 %v349
        %v489 = vpop.f32.mrb[0].mxu0
        %v490 = vadd.f32 %v288, %v489
        %v491 = vpop.f32.mrb[0].mxu0
        %v492 = vadd.f32 %v288, %v491
        %493 = vmatprep.mubr.f32.mxu0 0.0
        %494 = vmatmul.mubr.f32.gmra.mrb[0].mxu0 %v352
        %v495 = vpop.f32.mrb[0].mxu0
        %v496 = vadd.f32 %v293, %v495
        %v497 = vpop.f32.mrb[0].mxu0
        %v498 = vadd.f32 %v293, %v497
        %499 = vmatprep.mubr.f32.mxu0 0.0
        %500 = vmatmul.mubr.f32.gmra.mrb[0].mxu0 %v355
        %v501 = vpop.f32.mrb[0].mxu0
        %v502 = vadd.f32 %v298, %v501
        %v503 = vpop.f32.mrb[0].mxu0
        %v504 = vadd.f32 %v298, %v503
        %505 = vmatprep.mubr.f32.mxu0 0.0
        %506 = vmatmul.mubr.f32.gmra.mrb[0].mxu0 %v358
        %v507 = vpop.f32.mrb[0].mxu0
        %v508 = vadd.f32 %v303, %v507
        %v509 = vpop.f32.mrb[0].mxu0
        %v510 = vadd.f32 %v303, %v509
        %511 = vmatprep.mubr.f32.mxu0 0.0
        %512 = vmatmul.mubr.f32.gmra.mrb[0].mxu0 %v361
        %v513 = vpop.f32.mrb[0].mxu0
        %v514 = vadd.f32 %v308, %v513
        %v515 = vpop.f32.mrb[0].mxu0
        %v516 = vadd.f32 %v308, %v515
        %517 = vmatprep.mubr.f32.mxu0 0.0
        %518 = vmatmul.mubr.f32.gmra.mrb[0].mxu0 %v364
        %v519 = vpop.f32.mrb[0].mxu0
        %v520 = vadd.f32 %v313, %v519
        %v521 = vpop.f32.mrb[0].mxu0
        %v522 = vadd.f32 %v313, %v521
        %523 = vmatprep.mubr.f32.mxu0 0.0
        %524 = vmatmul.mubr.f32.gmra.mrb[0].mxu0 %v367
        %v525 = vpop.f32.mrb[0].mxu0
        %v526 = vadd.f32 %v318, %v525
        %v527 = vpop.f32.mrb[0].mxu0
        %v528 = vadd.f32 %v318, %v527
        %529 = vdwg.mxu0
        %530 = vst [vmem:[%s188] sm:$0xff] %v436
        %531 = vst [vmem:[%s188 + $0x8] sm:$0xff] %v438
        %532 = vst [vmem:[%s188 + $0x10] sm:$0xff] %v442
        %533 = vst [vmem:[%s188 + $0x18] sm:$0xff] %v444
        %534 = vst [vmem:[%s188 + $0x20] sm:$0xff] %v448
        %535 = vst [vmem:[%s188 + $0x28] sm:$0xff] %v450
        %536 = vst [vmem:[%s188 + $0x30] sm:$0xff] %v454
        %537 = vst [vmem:[%s188 + $0x38] sm:$0xff] %v456
        %538 = vst [vmem:[%s188 + $0x40] sm:$0xff] %v460
        %539 = vst [vmem:[%s188 + $0x48] sm:$0xff] %v462
        %540 = vst [vmem:[%s188 + $0x50] sm:$0xff] %v466
        %541 = vst [vmem:[%s188 + $0x58] sm:$0xff] %v468
        %542 = vst [vmem:[%s188 + $0x60] sm:$0xff] %v472
        %543 = vst [vmem:[%s188 + $0x68] sm:$0xff] %v474
        %544 = vst [vmem:[%s188 + $0x70] sm:$0xff] %v478
        %545 = vst [vmem:[%s188 + $0x78] sm:$0xff] %v480
        %546 = vst [vmem:[%s188 + $0x80] sm:$0xff] %v484
        %547 = vst [vmem:[%s188 + $0x88] sm:$0xff] %v486
        %548 = vst [vmem:[%s188 + $0x90] sm:$0xff] %v490
        %549 = vst [vmem:[%s188 + $0x98] sm:$0xff] %v492
        %550 = vst [vmem:[%s188 + $0xa0] sm:$0xff] %v496
        %551 = vst [vmem:[%s188 + $0xa8] sm:$0xff] %v498
        %552 = vst [vmem:[%s188 + $0xb0] sm:$0xff] %v502
        %553 = vst [vmem:[%s188 + $0xb8] sm:$0xff] %v504
        %554 = vst [vmem:[%s188 + $0xc0] sm:$0xff] %v508
        %555 = vst [vmem:[%s188 + $0xc8] sm:$0xff] %v510
        %556 = vst [vmem:[%s188 + $0xd0] sm:$0xff] %v514
        %557 = vst [vmem:[%s188 + $0xd8] sm:$0xff] %v516
        %558 = vst [vmem:[%s188 + $0xe0] sm:$0xff] %v520
        %559 = vst [vmem:[%s188 + $0xe8] sm:$0xff] %v522
        %560 = vst [vmem:[%s188 + $0xf0] sm:$0xff] %v526
        %561 = vst [vmem:[%s188 + $0xf8] sm:$0xff] %v528
        %s562 = sand.u32 %s109, 1
        %s563 = scalar_lea.sflag [#allocation3], %s562
        %s564 = sand.u32 %s109, 1
        %s565 = smul.addr %s564, 256
        %s566 = scalar_lea.vmem [#allocation2], %s565
        // Predicated region
        $region33: #{tpu_custom_call.1} parent=31 // pred_check
          %p567 = pneg %p119
        $region34: #{tpu_custom_call.1} parent=31 // pred_check_branch
          %569 = sbr.rel (%p567) target = $region36
        $region35: #{tpu_custom_call.1} parent=31 // pred_region
          %s570 = smul.u32 2, %s22
          %s572 = ssub.s32 4096, 4096
          %573 = vsyncadd %s563, %s572
          %s574 = smul.addr %s21, 32
          %s575 = sadd.s32 %s570, %s574
          %s576 = smul.addr %s575, 128
          %s577 = scalar_lea.hbm %s3, %s576
          %s578 = sshll.u32 %s566, 4
          %s579 = int_to_ptr.vmem [resolvable:$true] %s578
          %584 = dma.vmem_to_hbm [thread:$0]  %s579, 4096, %s577, %s563, 256, 256, 16
        $region36: #{tpu_custom_call.1} parent=31 // pred_fallthru
          _
      $region32: #{tpu_custom_call.1} parent=5 // pred_fallthru
        _
      %p585 = scmp.le.s32.totalorder 2, %s12
      // Predicated region
      $region37: #{tpu_custom_call.1} parent=5 // pred_check
        %p586 = pneg %p585
      $region38: #{tpu_custom_call.1} parent=5 // pred_check_branch
        %588 = sbr.rel (%p586) target = $region40
      $region39: #{tpu_custom_call.1} parent=5 // pred_region
        %s589 = ssub.s32 %s12, 2
        // Predicated region
        $region41: #{tpu_custom_call.1} parent=39 // pred_check
          %p590 = pneg %p125
        $region42: #{tpu_custom_call.1} parent=39 // pred_check_branch
          %592 = sbr.rel (%p590) target = $region44
        $region43: #{tpu_custom_call.1} parent=39 // pred_region
          %s593 = sand.u32 %s110, 1
          %s594 = scalar_lea.sflag [#allocation3], %s593
          %s595 = sand.u32 %s110, 1
          %s596 = smul.addr %s595, 256
          %s597 = scalar_lea.vmem [#allocation2], %s596
          %598 = dma.done %s594, 4096
        $region44: #{tpu_custom_call.1} parent=39 // pred_fallthru
          _
      $region40: #{tpu_custom_call.1} parent=5 // pred_fallthru
        _
    $region6: #{tpu_custom_call.1} parent=1 // loop_footer
      %s16 = sadd.s32 1, %s12
    $region7: #{tpu_custom_call.1} parent=1 // loop_footer_branch
      %11 = sbr.rel target = $region3
    $region8: #{tpu_custom_call.1} parent=1 // loop_exit
      _
    %599 = vsyncpa [#allocation3], 1
    %s600 = scalar_lea.sflag [#allocation3], 1
    %601 = vsyncpa %s600, 1

</llo_original>
